<compile_context>
chip_gen: v6e
topology: v6e:2x2x1
jax: 0.10.0
libtpu: 0.0.40
codegen_flags: <defaults>
</compile_context>

<pallas_src>
import numpy as np
import jax
import jax.numpy as jnp
from jax.experimental import pallas as pl
from jax.experimental.pallas import tpu as pltpu

LANES = 512            # lane width of the flattened-batch slab (multiple of 128)
BLOCK_ROWS_MAX = 1024  # 1024 x 512 f32 = 2 MiB block; 2x(in+out) buffers = 8 MiB (v5e-safe)


def _pick_block_rows(rows_total: int) -> int:
    """Rows per grid step: <= 2 MiB, multiple of 8 (or == full dim), >= 2 grid steps when possible."""
    if rows_total <= 8:
        return rows_total                     # single block == full array (tiny batch)
    target = min(BLOCK_ROWS_MAX, pl.cdiv(rows_total, 2))   # aim for >= 2 steps (v7x 2-TC split)
    return max(8, 8 * (target // 8))


def _concrete_negatives(w3):
    """Per-k 'w3[k] < 0' bools if w3 is concrete (not a tracer), else None."""
    try:
        v = np.asarray(w3)
    except Exception:                         # under jit / vmap / grad: no concrete value
        return None
    return tuple(bool(s < 0.0) for s in v.reshape(-1))


def _make_kernel(neg_signs):
    """Build the fused affine(1->5) -> ReLU -> affine(5->1) kernel.

    neg_signs is None  -> generic kernel, params packed as [w12(5), b12(5), w3(5), b3(1)].
    neg_signs is tuple -> sign-folded kernel, params packed as [|w3|*w12(5), |w3|*b12(5), b3(1)];
                          the sign of w3[k] is baked in as add vs subtract (fewer VPU ops).
    x_ref / o_ref: (block_rows, LANES) f32 VMEM slabs holding flattened batch elements.
    """
    if neg_signs is None:
        def kernel(p_ref, x_ref, o_ref):
            x = x_ref[...]
            acc = jnp.maximum(x * p_ref[0] + p_ref[5], 0.0) * p_ref[10] + p_ref[15]
            for k in range(1, 5):             # static unroll: pure VPU work
                acc = acc + jnp.maximum(x * p_ref[k] + p_ref[5 + k], 0.0) * p_ref[10 + k]
            o_ref[...] = acc
    else:
        def kernel(p_ref, x_ref, o_ref):
            x = x_ref[...]
            t = jnp.maximum(x * p_ref[0] + p_ref[5], 0.0)
            acc = (p_ref[10] - t) if neg_signs[0] else (p_ref[10] + t)
            for k in range(1, 5):             # static unroll: 4 VPU ops per hidden unit
                t = jnp.maximum(x * p_ref[k] + p_ref[5 + k], 0.0)
                acc = (acc - t) if neg_signs[k] else (acc + t)
            o_ref[...] = acc
    return kernel


def simple_model_forward(x, params):
    """x: (B, 1) float32; params store weights as (in, out) so y = x @ W + b."""
    B = x.shape[0]

    # Fold Linear(1,5) and Linear(5,5) (no nonlinearity between them) into one 1->5 affine.
    w12 = (params["w1"] @ params["w2"]).reshape(5)                  # (5,)
    b12 = (params["b1"] @ params["w2"] + params["b2"]).reshape(5)   # (5,)
    w3 = params["w3"].reshape(5)                                    # (5,)
    b3 = params["b3"].reshape(1)                                    # (1,)

    neg = _concrete_negatives(w3)
    if neg is not None:
        # Trace-time-constant weights: fold |w3| into the affine, bake signs into the kernel.
        aw3 = jnp.abs(w3)
        packed = jnp.concatenate([aw3 * w12, aw3 * b12, b3])        # (11,)
    else:
        packed = jnp.concatenate([w12, b12, w3, b3])                # (16,)
    kernel = _make_kernel(neg)

    # Lane-dense batch layout: pad only to lane (512) granularity, and only if needed.
    rows_total = pl.cdiv(B, LANES)
    b_pad = rows_total * LANES
    xf = x.reshape(B)
    if b_pad != B:
        xf = jnp.pad(xf, (0, b_pad - B))      # skipped entirely when B is lane-aligned
    x2d = xf.reshape(rows_total, LANES)

    block_rows = _pick_block_rows(rows_total)
    n_tiles = pl.cdiv(rows_total, block_rows)  # ragged last block handled by Pallas

    out2d = pl.pallas_call(
        kernel,
        out_shape=jax.ShapeDtypeStruct((rows_total, LANES), jnp.float32),
        grid=(n_tiles,),
        in_specs=[
            pl.BlockSpec(memory_space=pltpu.MemorySpace.SMEM),        # packed params
            pl.BlockSpec((block_rows, LANES), lambda i: (i, 0)),      # batch slab (lane-dense)
        ],
        out_specs=pl.BlockSpec((block_rows, LANES), lambda i: (i, 0)),
        compiler_params=pltpu.CompilerParams(
            dimension_semantics=("parallel",),   # batch axis: v7x shards across its 2 TCs
        ),
    )(packed, x2d)

    out = out2d.reshape(b_pad)
    if b_pad != B:
        out = out[:B]
    return out.reshape(B, 1)


def init_params(key):
    # Deterministic synthetic init (PyTorch-style uniform bounds, fixed seed).
    k1, k2, k3, k4, k5, k6 = jax.random.split(key, 6)

    def lin(kw, kb, fan_in, fan_out):
        bound = 1.0 / jnp.sqrt(jnp.float32(fan_in))
        # stored as (in, out) so the forward does x @ W + b
        w = jax.random.uniform(kw, (fan_in, fan_out), jnp.float32, -bound, bound)
        b = jax.random.uniform(kb, (1, fan_out), jnp.float32, -bound, bound)
        return w, b

    w1, b1 = lin(k1, k2, 1, 5)   # to_in
    w2, b2 = lin(k3, k4, 5, 5)   # fc1
    w3, b3 = lin(k5, k6, 5, 1)   # to_out
    return {"w1": w1, "b1": b1, "w2": w2, "b2": b2, "w3": w3, "b3": b3}


def _reference(x, params):
    # Unfolded pure-JAX reference matching the PyTorch module exactly.
    h = x @ params["w1"] + params["b1"]
    h = h @ params["w2"] + params["b2"]
    h = jnp.maximum(h, 0.0)
    return h @ params["w3"] + params["b3"]


if __name__ == "__main__":
    key = jax.random.PRNGKey(0)
    pkey, xkey = jax.random.split(key)
    params = init_params(pkey)

    # Small batches exercising: tiny single block, padded single block,
    # padded + ragged multi-tile, and aligned (no-pad) + ragged multi-tile grids.
    for B in (8, 533, 4645, 6144):
        xb = jax.random.normal(jax.random.fold_in(xkey, B), (B, 1), jnp.float32)
        out = jax.block_until_ready(simple_model_forward(xb, params))
        ref = _reference(xb, params)
        assert out.shape == (B, 1)
        err = float(jnp.max(jnp.abs(out - ref)))
        assert jnp.allclose(out, ref, atol=1e-5, rtol=1e-5), f"mismatch at B={B}: {err}"

    # Exercise the generic (traced-weights) kernel path under jit as well.
    B = 1024
    xb = jax.random.normal(jax.random.fold_in(xkey, B), (B, 1), jnp.float32)
    out = jax.block_until_ready(jax.jit(simple_model_forward)(xb, params))
    ref = _reference(xb, params)
    assert jnp.allclose(out, ref, atol=1e-5, rtol=1e-5), "mismatch under jit"

    print("KERNEL_OK")
</pallas_src>

<mosaic_0001>
module attributes {stable_mosaic.version = 11 : i64} {
  func.func @kernel(%arg0: i32, %arg1: memref<11xf32, #tpu.memory_space<smem>>, %arg2: memref<1x512xf32, #tpu.memory_space<vmem>>, %arg3: memref<1x512xf32, #tpu.memory_space<vmem>>) attributes {dimension_semantics = [#tpu.dimension_semantics<parallel>], iteration_bounds = array<i64: 1>, scalar_prefetch = 0 : i64, scratch_operands = 0 : i64, tpu.core_type = #tpu.core_type<tc>, window_params = [{transform_indices = @transform_0, window_bounds = array<i64: 11>}, {transform_indices = @transform_1, window_bounds = array<i64: 1, 512>}, {transform_indices = @transform_2, window_bounds = array<i64: 1, 512>}]} {
    %c0 = arith.constant 0 : index
    %c0_0 = arith.constant 0 : index
    %0 = vector.load %arg2[%c0, %c0_0] : memref<1x512xf32, #tpu.memory_space<vmem>>, vector<1x512xf32>
    %c0_1 = arith.constant 0 : index
    %1 = memref.load %arg1[%c0_1] : memref<11xf32, #tpu.memory_space<smem>>
    %2 = vector.broadcast %1 : f32 to vector<1x512xf32>
    %3 = arith.mulf %0, %2 : vector<1x512xf32>
    %c5 = arith.constant 5 : index
    %4 = memref.load %arg1[%c5] : memref<11xf32, #tpu.memory_space<smem>>
    %5 = vector.broadcast %4 : f32 to vector<1x512xf32>
    %6 = arith.addf %3, %5 : vector<1x512xf32>
    %cst = arith.constant 0.000000e+00 : f32
    %7 = vector.broadcast %cst : f32 to vector<1x512xf32>
    %8 = arith.maximumf %6, %7 : vector<1x512xf32>
    %c10 = arith.constant 10 : index
    %9 = memref.load %arg1[%c10] : memref<11xf32, #tpu.memory_space<smem>>
    %10 = vector.broadcast %9 : f32 to vector<1x512xf32>
    %11 = arith.addf %10, %8 : vector<1x512xf32>
    %c1 = arith.constant 1 : index
    %12 = memref.load %arg1[%c1] : memref<11xf32, #tpu.memory_space<smem>>
    %13 = vector.broadcast %12 : f32 to vector<1x512xf32>
    %14 = arith.mulf %0, %13 : vector<1x512xf32>
    %c6 = arith.constant 6 : index
    %15 = memref.load %arg1[%c6] : memref<11xf32, #tpu.memory_space<smem>>
    %16 = vector.broadcast %15 : f32 to vector<1x512xf32>
    %17 = arith.addf %14, %16 : vector<1x512xf32>
    %cst_2 = arith.constant 0.000000e+00 : f32
    %18 = vector.broadcast %cst_2 : f32 to vector<1x512xf32>
    %19 = arith.maximumf %17, %18 : vector<1x512xf32>
    %20 = arith.subf %11, %19 : vector<1x512xf32>
    %c2 = arith.constant 2 : index
    %21 = memref.load %arg1[%c2] : memref<11xf32, #tpu.memory_space<smem>>
    %22 = vector.broadcast %21 : f32 to vector<1x512xf32>
    %23 = arith.mulf %0, %22 : vector<1x512xf32>
    %c7 = arith.constant 7 : index
    %24 = memref.load %arg1[%c7] : memref<11xf32, #tpu.memory_space<smem>>
    %25 = vector.broadcast %24 : f32 to vector<1x512xf32>
    %26 = arith.addf %23, %25 : vector<1x512xf32>
    %cst_3 = arith.constant 0.000000e+00 : f32
    %27 = vector.broadcast %cst_3 : f32 to vector<1x512xf32>
    %28 = arith.maximumf %26, %27 : vector<1x512xf32>
    %29 = arith.addf %20, %28 : vector<1x512xf32>
    %c3 = arith.constant 3 : index
    %30 = memref.load %arg1[%c3] : memref<11xf32, #tpu.memory_space<smem>>
    %31 = vector.broadcast %30 : f32 to vector<1x512xf32>
    %32 = arith.mulf %0, %31 : vector<1x512xf32>
    %c8 = arith.constant 8 : index
    %33 = memref.load %arg1[%c8] : memref<11xf32, #tpu.memory_space<smem>>
    %34 = vector.broadcast %33 : f32 to vector<1x512xf32>
    %35 = arith.addf %32, %34 : vector<1x512xf32>
    %cst_4 = arith.constant 0.000000e+00 : f32
    %36 = vector.broadcast %cst_4 : f32 to vector<1x512xf32>
    %37 = arith.maximumf %35, %36 : vector<1x512xf32>
    %38 = arith.subf %29, %37 : vector<1x512xf32>
    %c4 = arith.constant 4 : index
    %39 = memref.load %arg1[%c4] : memref<11xf32, #tpu.memory_space<smem>>
    %40 = vector.broadcast %39 : f32 to vector<1x512xf32>
    %41 = arith.mulf %0, %40 : vector<1x512xf32>
    %c9 = arith.constant 9 : index
    %42 = memref.load %arg1[%c9] : memref<11xf32, #tpu.memory_space<smem>>
    %43 = vector.broadcast %42 : f32 to vector<1x512xf32>
    %44 = arith.addf %41, %43 : vector<1x512xf32>
    %cst_5 = arith.constant 0.000000e+00 : f32
    %45 = vector.broadcast %cst_5 : f32 to vector<1x512xf32>
    %46 = arith.maximumf %44, %45 : vector<1x512xf32>
    %47 = arith.subf %38, %46 : vector<1x512xf32>
    %c0_6 = arith.constant 0 : index
    %c0_7 = arith.constant 0 : index
    %48 = vector.load %arg3[%c0_6, %c0_7] : memref<1x512xf32, #tpu.memory_space<vmem>>, vector<1x512xf32>
    tpu.vector_store %arg3[%c0_6, %c0_7], %47 {strides = array<i32>} : memref<1x512xf32, #tpu.memory_space<vmem>>, vector<1x512xf32>,
    return
  }
  func.func @transform_0(%arg0: i32) -> i32 {
    %c0_i32 = arith.constant 0 : i32
    %c0_i32_0 = arith.constant 0 : i32
    return %c0_i32 : i32
  }
  func.func @transform_1(%arg0: i32) -> (i32, i32) {
    %c0_i32 = arith.constant 0 : i32
    %c0_i32_0 = arith.constant 0 : i32
    return %arg0, %c0_i32 : i32, i32
  }
  func.func @transform_2(%arg0: i32) -> (i32, i32) {
    %c0_i32 = arith.constant 0 : i32
    %c0_i32_0 = arith.constant 0 : i32
    return %arg0, %c0_i32 : i32, i32
  }
}

</mosaic_0001>

<llo_original>
// kernel: tpu_custom_call.1
$region0: #{tpu_custom_call.1}
  #allocation0 [shape = 'u32[]', space=smem, size = 0x4, offset = 0x4, fixed_abs, tag = 'smem constant byte address 0x4 - core index']
  #allocation1 [shape = 'u32[144,128]{1,0:T(1,128)}', space=vmem, size = 0x12000, scoped, tag = 'internal scratch']
  %s0 = inlined_call_operand.hbm [shape: f32[11], index: 0, kind: input, shape index: {}]
  %s1 = inlined_call_operand.hbm [shape: f32[1,512], index: 1, kind: input, shape index: {}]
  %s2 = inlined_call_operand.hbm [shape: f32[1,512], index: 2, kind: output, shape index: {}]
  %s3 = sld [smem:[#allocation0]]
  $region26: #{tpu_custom_call.1} parent=0
    _
  %s5 = ssub.s32 1, %s3
  %s6 = scalar_select 0, %s5, %s3
  $region1: #{tpu_custom_call.1} parent=0
    #allocation2 [shape = 'u8[512]{0}', space=smem, size = 0x200, scoped, tag = 'input window, operand 0, single buffered']
    #allocation3 [shape = 's32[1]{0}', space=sflag, size = 0x4, scoped, tag = 'scoped memory for tpu_custom_call.1']
    #allocation4 [shape = 's32[1]{0}', space=sflag, size = 0x4, scoped, tag = 'scoped memory for tpu_custom_call.1']
    #allocation5 [shape = 's32[1]{0}', space=sflag, size = 0x4, scoped, tag = 'scoped memory for tpu_custom_call.1']
    #allocation6 [shape = 'u8[2048]{0}', space=vmem, size = 0x800, scoped, tag = 'input window, operand 1, single buffered']
    #allocation7 [shape = 'u8[2048]{0}', space=vmem, size = 0x800, scoped, tag = 'output window, operand 0, single buffered']
    %7 = vsyncpa [#allocation5], 0
    %8 = vsyncpa [#allocation3], 0
    %9 = vsyncpa [#allocation4], 0
    // Predicated region
    $region2: #{tpu_custom_call.1} parent=1 // pred_check
      _
    $region3: #{tpu_custom_call.1} parent=1 // pred_check_branch
      %11 = sbr.rel (0) target = $region5
    $region4: #{tpu_custom_call.1} parent=1 // pred_region
      %s13 = ssub.s32 16, 16
      %14 = vsyncadd [#allocation5], %s13
      %17 = dma.hbm_to_smem %s0, 16, [#allocation2], [#allocation5]
    $region5: #{tpu_custom_call.1} parent=1 // pred_fallthru
      _
    // Predicated region
    $region6: #{tpu_custom_call.1} parent=1 // pred_check
      _
    $region7: #{tpu_custom_call.1} parent=1 // pred_check_branch
      %19 = sbr.rel (0) target = $region9
    $region8: #{tpu_custom_call.1} parent=1 // pred_region
      %s21 = ssub.s32 64, 64
      %22 = vsyncadd [#allocation3], %s21
      %s24 = sshll.u32 [#allocation6], 4
      %s25 = int_to_ptr.vmem [resolvable:$true] %s24
      %27 = dma.hbm_to_vmem [thread:$0]  %s1, 64, %s25, [#allocation3]
    $region9: #{tpu_custom_call.1} parent=1 // pred_fallthru
      _
    // Predicated region
    $region10: #{tpu_custom_call.1} parent=1 // pred_check
      _
    $region11: #{tpu_custom_call.1} parent=1 // pred_check_branch
      %29 = sbr.rel (0) target = $region13
    $region12: #{tpu_custom_call.1} parent=1 // pred_region
      %30 = dma.done [#allocation5], 16
    $region13: #{tpu_custom_call.1} parent=1 // pred_fallthru
      _
    // Predicated region
    $region14: #{tpu_custom_call.1} parent=1 // pred_check
      _
    $region15: #{tpu_custom_call.1} parent=1 // pred_check_branch
      %32 = sbr.rel (0) target = $region17
    $region16: #{tpu_custom_call.1} parent=1 // pred_region
      %33 = dma.done [#allocation3], 64
    $region17: #{tpu_custom_call.1} parent=1 // pred_fallthru
      _
    %34 = sfence
    %v35 = vld [vmem:[#allocation6] sm:$0xf]
    %s36 = sld [smem:[#allocation2]]
    %v37 = vstv %s36
    %v38 = vmul.f32 %v35, %v37
    %s39 = sld [smem:[#allocation2 + $0x5]]
    %v40 = vstv %s39
    %v41 = vadd.f32 %v38, %v40
    %v42 = vmax.f32 %v41, 0.0
    %s43 = sld [smem:[#allocation2 + $0xa]]
    %v44 = vstv %s43
    %v45 = vadd.f32 %v44, %v42
    %s46 = sld [smem:[#allocation2 + $0x1]]
    %v47 = vstv %s46
    %v48 = vmul.f32 %v35, %v47
    %s49 = sld [smem:[#allocation2 + $0x6]]
    %v50 = vstv %s49
    %v51 = vadd.f32 %v48, %v50
    %v52 = vmax.f32 %v51, 0.0
    %v53 = vsub.f32 %v45, %v52
    %s54 = sld [smem:[#allocation2 + $0x2]]
    %v55 = vstv %s54
    %v56 = vmul.f32 %v35, %v55
    %s57 = sld [smem:[#allocation2 + $0x7]]
    %v58 = vstv %s57
    %v59 = vadd.f32 %v56, %v58
    %v60 = vmax.f32 %v59, 0.0
    %v61 = vadd.f32 %v53, %v60
    %s62 = sld [smem:[#allocation2 + $0x3]]
    %v63 = vstv %s62
    %v64 = vmul.f32 %v35, %v63
    %s65 = sld [smem:[#allocation2 + $0x8]]
    %v66 = vstv %s65
    %v67 = vadd.f32 %v64, %v66
    %v68 = vmax.f32 %v67, 0.0
    %v69 = vsub.f32 %v61, %v68
    %s70 = sld [smem:[#allocation2 + $0x4]]
    %v71 = vstv %s70
    %v72 = vmul.f32 %v35, %v71
    %s73 = sld [smem:[#allocation2 + $0x9]]
    %v74 = vstv %s73
    %v75 = vadd.f32 %v72, %v74
    %v76 = vmax.f32 %v75, 0.0
    %v77 = vsub.f32 %v69, %v76
    %v78 = vlaneseq
    %vm79 = vcmp.ge.s32.totalorder %v78, 0
    %vm80 = vcmp.lt.s32.totalorder %v78, 512
    %vm81 = vmand %vm79, %vm80
    %82 = vst.msk [vmem:[#allocation7] sm:$0xf] %vm81, %v77
    // Predicated region
    $region18: #{tpu_custom_call.1} parent=1 // pred_check
      _
    $region19: #{tpu_custom_call.1} parent=1 // pred_check_branch
      %84 = sbr.rel (0) target = $region21
    $region20: #{tpu_custom_call.1} parent=1 // pred_region
      %s86 = ssub.s32 64, 64
      %87 = vsyncadd [#allocation4], %s86
      %s89 = sshll.u32 [#allocation7], 4
      %s90 = int_to_ptr.vmem [resolvable:$true] %s89
      %92 = dma.vmem_to_hbm [thread:$0]  %s90, 64, %s2, [#allocation4]
    $region21: #{tpu_custom_call.1} parent=1 // pred_fallthru
      _
    // Predicated region
    $region22: #{tpu_custom_call.1} parent=1 // pred_check
      _
    $region23: #{tpu_custom_call.1} parent=1 // pred_check_branch
      %94 = sbr.rel (0) target = $region25
    $region24: #{tpu_custom_call.1} parent=1 // pred_region
      %95 = dma.done [#allocation4], 64
    $region25: #{tpu_custom_call.1} parent=1 // pred_fallthru
      _
    %96 = vsyncpa [#allocation3], 1
    %97 = vsyncpa [#allocation4], 1
    %98 = vsyncpa [#allocation5], 1

</llo_original>
